<compile_context>
chip_gen: v5e
topology: v5e:2x2
jax: 0.10.0
libtpu: 0.0.40
codegen_flags: <defaults>
</compile_context>

<pallas_src>
import math

import jax
import jax.numpy as jnp
from jax.experimental import pallas as pl
from jax.experimental.pallas import tpu as pltpu


_MAX_LANE_W = 4096  # cap on the folded lane width (keeps per-row vreg count sane)


def _second_order_h_reflect_kernel(x_ref, o_ref):
    """pack == 1: each lane-row is exactly one logical image row of width W.

    Reflection is folded directly into the shifted operands, so the kernel is
    pure adds (no iota, no modulo, no selects)."""
    x = x_ref[...].astype(jnp.float32)                        # v5e: no bf16 VPU
    left = jnp.concatenate([x[:, 1:2], x[:, :-1]], axis=1)    # x[j-1], x[-1] := x[1]
    right = jnp.concatenate([x[:, 1:], x[:, -2:-1]], axis=1)  # x[j+1], x[W]  := x[W-2]
    o_ref[...] = ((left + right) - (x + x)).astype(o_ref.dtype)


def _second_order_h_packed_kernel(c_ref, x_ref, o_ref):
    """pack > 1: several logical rows of width W folded into one lane row.

    c_ref is a (2, lane_w) f32 coefficient table (constant index_map ->
    fetched once, resident in VMEM):
        out[j] = cL[j]*x[j-1] + cR[j]*x[j+1] - 2*x[j]
    with (cL, cR) = (1, 1) inside a row, (0, 2) at a row's first column and
    (2, 0) at its last column (reflection).  No per-tile iota/modulo."""
    x = x_ref[...].astype(jnp.float32)
    left = jnp.concatenate([x[:, :1], x[:, :-1]], axis=1)   # junk at j==0   (cL==0 there)
    right = jnp.concatenate([x[:, 1:], x[:, -1:]], axis=1)  # junk at j==end (cR==0 there)
    cl = c_ref[0:1, :]
    cr = c_ref[1:2, :]
    o_ref[...] = (cl * left + cr * right - (x + x)).astype(o_ref.dtype)


def _choose_pack(rows, w):
    """Fold `pack` consecutive rows into the lane axis so lane width is a
    multiple of 128 (unmasked full-width stores, dense DMA) when possible."""
    cand = 128 // math.gcd(w, 128)          # minimal fold with (w*cand) % 128 == 0
    if cand == 1:
        return 1
    if rows % cand == 0 and w * cand <= _MAX_LANE_W:
        return cand
    # Exact fold impossible: largest divisor of cand that divides rows
    # (lanes are not a full 128-multiple but as dense as we can make them).
    best = 1
    for d in range(2, cand + 1):
        if cand % d == 0 and rows % d == 0 and w * d <= _MAX_LANE_W:
            best = d
    return best


def _budgets():
    """Per-generation (block f32 working-set bytes, vmem_limit_bytes).

    v7x-class: 64 MiB VMEM per TensorCore -> small blocks, limit <= 40 MiB
    (whole-block f32 temporaries around the shifted adds must fit).
    v5e/v6e: 128 MiB VMEM -> bigger blocks amortize ~0.35 us per-step overhead.
    The 'big' numbers stay safe even if the query misreports on v7x."""
    try:
        vmem_cap = pltpu.get_tpu_info().vmem_capacity_bytes
    except Exception:  # no TPU (interpret mode) / API drift -> conservative
        vmem_cap = 64 * 1024 * 1024
    if vmem_cap > 96 * 1024 * 1024:               # v5e / v6e (128 MiB)
        return 6 * 1024 * 1024, 56 * 1024 * 1024
    return 3 * 1024 * 1024, 40 * 1024 * 1024      # v7x-class (64 MiB)


def _pick_rb(rows2, lane_w, block_f32_bytes):
    """Rows per grid step: multiple of 8 (or the full extent), sized to the
    f32 working-set budget, with >= 2 grid steps whenever the row count allows
    (so the 'parallel' axis feeds both v7x TensorCores), preferring a rb that
    divides rows2 to avoid a masked tail block."""
    if rows2 <= 8:
        return rows2
    rb = max(8, (block_f32_bytes // (lane_w * 4)) // 8 * 8)
    half = max(8, (((rows2 + 1) // 2) // 8) * 8)     # force at least 2 steps
    rb = min(rb, half)
    if rows2 % rb != 0:
        # Accept a divisor of rows2 only if it shrinks rb by <= ~25%
        # (keeps per-step overhead amortized).
        lo = max(8, (rb - rb // 4) // 8 * 8)
        d = rb - 8
        while d >= lo:
            if rows2 % d == 0:
                rb = d
                break
            d -= 8
    return rb


def second_order(x, *, ksize=3, mode="h", interpret=False):
    """Pallas forward of SecondOrder (defaults ksize=3, mode='h') on NCHW input."""
    if mode != "h" or ksize != 3:
        # TODO(synk): modes 'v'/'d' and ksize != 3 are not implemented.
        raise NotImplementedError(
            "Only the module defaults (ksize=3, mode='h') are implemented.")
    n, c, h, w = x.shape
    if w < 2:
        # Reflect-padded [1,-2,1] over a single column is identically zero.
        return jnp.zeros_like(x)

    rows = n * c * h
    pack = _choose_pack(rows, w)
    rows2 = rows // pack
    lane_w = w * pack
    x2 = x.reshape(rows2, lane_w)          # contiguous NCHW -> free reshape

    block_f32_bytes, vmem_limit = _budgets()
    rb = _pick_rb(rows2, lane_w, block_f32_bytes)
    grid = (pl.cdiv(rows2, rb),)

    itemsize = jnp.dtype(x.dtype).itemsize
    cost = pl.CostEstimate(flops=5 * x.size, transcendentals=0,
                           bytes_accessed=2 * x.size * itemsize)

    row_spec = pl.BlockSpec((rb, lane_w), lambda i: (i, 0))
    if pack == 1:
        kernel = _second_order_h_reflect_kernel
        operands = (x2,)
        in_specs = [row_spec]
    else:
        # Tiny per-lane coefficient table, built once on the host side.
        col = jnp.arange(lane_w, dtype=jnp.int32) % w
        first = (col == 0).astype(jnp.float32)
        last = (col == w - 1).astype(jnp.float32)
        coeff = jnp.stack([1.0 - first + last, 1.0 + first - last], axis=0)
        kernel = _second_order_h_packed_kernel
        operands = (coeff, x2)
        in_specs = [pl.BlockSpec((2, lane_w), lambda i: (0, 0)), row_spec]

    out2 = pl.pallas_call(
        kernel,
        out_shape=jax.ShapeDtypeStruct((rows2, lane_w), x.dtype),
        grid=grid,
        in_specs=in_specs,
        out_specs=row_spec,
        compiler_params=pltpu.CompilerParams(
            dimension_semantics=("parallel",),   # shard row strips over v7x's 2 TCs
            vmem_limit_bytes=vmem_limit,
        ),
        cost_estimate=cost,
        interpret=interpret,
    )(*operands)
    return out2.reshape(n, c, h, w)


class SecondOrder:
    """Stateless mirror of the PyTorch module (fixed, non-trainable weights)."""

    def __init__(self, in_channels=64, out_channels=64, ksize=3, mode="h"):
        del in_channels, out_channels   # depthwise with a fixed kernel: no params
        self.ksize = ksize
        self.mode = mode

    def __call__(self, img):
        return second_order(img, ksize=self.ksize, mode=self.mode)


def _second_order_ref(x):
    """Pure-JAX reference: reflect pad on W + [1,-2,1] depthwise conv."""
    left = jnp.concatenate([x[..., 1:2], x[..., :-1]], axis=-1)
    right = jnp.concatenate([x[..., 1:], x[..., -2:-1]], axis=-1)
    return left + right - 2.0 * x


if __name__ == "__main__":
    # Main check: exact lane fold (W=16 -> pack=8, lane_w=128, 2 grid steps).
    x = jax.random.normal(jax.random.PRNGKey(0), (2, 4, 16, 16), dtype=jnp.float32)
    mod = SecondOrder(in_channels=4, out_channels=4, ksize=3, mode="h")
    y = jax.block_until_ready(mod(x))
    assert y.shape == x.shape
    err = float(jnp.max(jnp.abs(y - _second_order_ref(x))))
    assert err < 1e-5, f"max abs error {err}"

    # Partial-fold fallback + masked tail block (rows=60, W=16 -> pack=4).
    x2 = jax.random.normal(jax.random.PRNGKey(1), (2, 3, 10, 16), dtype=jnp.float32)
    y2 = jax.block_until_ready(second_order(x2))
    err2 = float(jnp.max(jnp.abs(y2 - _second_order_ref(x2))))
    assert err2 < 1e-5, f"max abs error (partial fold) {err2}"

    # pack==1 path with odd, non-dividing shape + masked tail block.
    x3 = jax.random.normal(jax.random.PRNGKey(2), (1, 3, 5, 7), dtype=jnp.float32)
    y3 = jax.block_until_ready(second_order(x3))
    err3 = float(jnp.max(jnp.abs(y3 - _second_order_ref(x3))))
    assert err3 < 1e-5, f"max abs error (pack==1) {err3}"

    print("KERNEL_OK")
</pallas_src>

<mosaic_0001>
module attributes {stable_mosaic.version = 11 : i64} {
  func.func @_second_order_h_packed_kernel(%arg0: i32, %arg1: memref<2x128xf32, #tpu.memory_space<vmem>>, %arg2: memref<8x128xf32, #tpu.memory_space<vmem>>, %arg3: memref<8x128xf32, #tpu.memory_space<vmem>>) attributes {dimension_semantics = [#tpu.dimension_semantics<parallel>], iteration_bounds = array<i64: 2>, scalar_prefetch = 0 : i64, scratch_operands = 0 : i64, tpu.core_type = #tpu.core_type<tc>, window_params = [{pipeline_mode = #tpu.pipeline_mode<synchronous>, transform_indices = @transform_0, window_bounds = array<i64: 2, 128>}, {transform_indices = @transform_1, window_bounds = array<i64: 8, 128>}, {transform_indices = @transform_2, window_bounds = array<i64: 8, 128>}]} {
    %c0 = arith.constant 0 : index
    %c0_0 = arith.constant 0 : index
    %0 = vector.load %arg2[%c0, %c0_0] : memref<8x128xf32, #tpu.memory_space<vmem>>, vector<8x128xf32>
    %1 = vector.extract_strided_slice %0 {offsets = [0, 0], sizes = [8, 1], strides = [1, 1]} : vector<8x128xf32> to vector<8x1xf32>
    %2 = vector.extract_strided_slice %0 {offsets = [0, 0], sizes = [8, 127], strides = [1, 1]} : vector<8x128xf32> to vector<8x127xf32>
    %3 = tpu.concatenate %1, %2 in 1 : vector<8x1xf32>, vector<8x127xf32> -> vector<8x128xf32>
    %4 = vector.extract_strided_slice %0 {offsets = [0, 1], sizes = [8, 127], strides = [1, 1]} : vector<8x128xf32> to vector<8x127xf32>
    %5 = vector.extract_strided_slice %0 {offsets = [0, 127], sizes = [8, 1], strides = [1, 1]} : vector<8x128xf32> to vector<8x1xf32>
    %6 = tpu.concatenate %4, %5 in 1 : vector<8x127xf32>, vector<8x1xf32> -> vector<8x128xf32>
    %c0_1 = arith.constant 0 : index
    %c0_2 = arith.constant 0 : index
    %7 = vector.load %arg1[%c0_1, %c0_2] : memref<2x128xf32, #tpu.memory_space<vmem>>, vector<1x128xf32>
    %c1 = arith.constant 1 : index
    %c0_3 = arith.constant 0 : index
    %8 = vector.load %arg1[%c1, %c0_3] : memref<2x128xf32, #tpu.memory_space<vmem>>, vector<1x128xf32>
    %9 = vector.broadcast %7 : vector<1x128xf32> to vector<8x128xf32>
    %10 = arith.mulf %9, %3 : vector<8x128xf32>
    %11 = vector.broadcast %8 : vector<1x128xf32> to vector<8x128xf32>
    %12 = arith.mulf %11, %6 : vector<8x128xf32>
    %13 = arith.addf %10, %12 : vector<8x128xf32>
    %14 = arith.addf %0, %0 : vector<8x128xf32>
    %15 = arith.subf %13, %14 : vector<8x128xf32>
    %c0_4 = arith.constant 0 : index
    %c0_5 = arith.constant 0 : index
    %16 = vector.load %arg3[%c0_4, %c0_5] : memref<8x128xf32, #tpu.memory_space<vmem>>, vector<8x128xf32>
    tpu.vector_store %arg3[%c0_4, %c0_5], %15 {strides = array<i32>} : memref<8x128xf32, #tpu.memory_space<vmem>>, vector<8x128xf32>,
    return
  }
  func.func @transform_0(%arg0: i32) -> (i32, i32) {
    %c0_i32 = arith.constant 0 : i32
    %c0_i32_0 = arith.constant 0 : i32
    %c0_i32_1 = arith.constant 0 : i32
    return %c0_i32, %c0_i32_0 : i32, i32
  }
  func.func @transform_1(%arg0: i32) -> (i32, i32) {
    %c0_i32 = arith.constant 0 : i32
    %c0_i32_0 = arith.constant 0 : i32
    return %arg0, %c0_i32 : i32, i32
  }
  func.func @transform_2(%arg0: i32) -> (i32, i32) {
    %c0_i32 = arith.constant 0 : i32
    %c0_i32_0 = arith.constant 0 : i32
    return %arg0, %c0_i32 : i32, i32
  }
}

</mosaic_0001>

<llo_original>
// kernel: tpu_custom_call.1
$region0: #{tpu_custom_call.1}
  #allocation0 [shape = 'u32[]', space=smem, size = 0x4, offset = 0x4, fixed_abs, tag = 'smem constant byte address 0x4 - core index']
  #allocation1 [shape = 'u32[72,128]{1,0:T(1,128)}', space=vmem, size = 0x9000, scoped, tag = 'internal scratch']
  %s0 = inlined_call_operand.hbm [shape: f32[2,128], index: 0, kind: input, shape index: {}]
  %s1 = inlined_call_operand.hbm [shape: f32[16,128], index: 1, kind: input, shape index: {}]
  %s2 = inlined_call_operand.hbm [shape: f32[16,128], index: 2, kind: output, shape index: {}]
  %s3 = sld [smem:[#allocation0]]
  $region49: #{tpu_custom_call.1} parent=0
    _
  %s5 = ssub.s32 1, %s3
  %s6 = scalar_select 0, %s5, %s3
  $region1: #{tpu_custom_call.1} parent=0
    #allocation2 [shape = 'u8[1024]{0}', space=vmem, size = 0x400, scoped, tag = 'input window, operand 0, single buffered']
    #allocation3 [shape = 's32[2]{0}', space=sflag, size = 0x8, scoped, tag = 'scoped memory for tpu_custom_call.1']
    #allocation4 [shape = 's32[2]{0}', space=sflag, size = 0x8, scoped, tag = 'scoped memory for tpu_custom_call.1']
    #allocation5 [shape = 'u8[8192]{0}', space=vmem, size = 0x2000, scoped, tag = 'input window, operand 1']
    #allocation6 [shape = 's32[2]{0}', space=sflag, size = 0x8, scoped, tag = 'scoped memory for tpu_custom_call.1']
    #allocation7 [shape = 'u8[8192]{0}', space=vmem, size = 0x2000, scoped, tag = 'output window, operand 0']
    %7 = vsyncpa [#allocation3], 0
    %8 = vsyncpa [#allocation6], 0
    %s9 = scalar_lea.sflag [#allocation6], 1
    %10 = vsyncpa %s9, 0
    %11 = vsyncpa [#allocation4], 0
    %s12 = scalar_lea.sflag [#allocation4], 1
    %13 = vsyncpa %s12, 0
    loop: start=0, step=1, limit=4
    $region2: #{tpu_custom_call.1} parent=1 // loop_pre_header
      _
    $region3: #{tpu_custom_call.1} parent=1 // loop_header
      %s15 = sphi 0, %s19
      %p16 = scmp.ge.s32.totalorder %s15, 4
      %s23 = sphi 0, %s23
      %s25 = sphi 0, %s23
      %s26 = sphi 0, %s25
      %s40 = sphi 0, %s26
      %s46 = sphi 0, %s48
      %s49 = sphi 0, %s46
      %s50 = sphi 0, %s49
      %s66 = sphi 0, %s50
      %s72 = sphi 0, %s74
      %s75 = sphi 0, %s72
      %s76 = sphi 0, %s75
      %s92 = sphi 0, %s76
    $region4: #{tpu_custom_call.1} parent=1 // loop_header_branch
      %18 = sbr.rel (%p16) target = $region8
    $region5: #{tpu_custom_call.1} parent=1 // loop_body
      %s20 = ssub.s32 %s15, 1
      %s21 = ssub.s32 %s15, 2
      %s22 = sadd.s32 %s15, 1
      %s24 = sadd.s32 %s23, 1
      %p27 = scmp.eq.s32.totalorder %s15, 1
      %p28 = scmp.ne.s32.totalorder %s23, %s25
      %p29 = scmp.eq.s32.totalorder %s15, 0
      %p30 = por %p28, %p29
      %p31 = scmp.ne.s32.totalorder %s23, %s25
      %p32 = scmp.eq.s32.totalorder %s20, 1
      %p33 = por %p31, %p32
      %p34 = scmp.ne.s32.totalorder %s25, %s26
      %p35 = scmp.eq.s32.totalorder %s20, 0
      %p36 = por %p34, %p35
      %p37 = scmp.ne.s32.totalorder %s25, %s26
      %p38 = scmp.eq.s32.totalorder %s21, 1
      %p39 = por %p37, %p38
      %p41 = scmp.ne.s32.totalorder %s26, %s40
      %p42 = scmp.eq.s32.totalorder %s21, 0
      %p43 = por %p41, %p42
      %s44 = ssub.s32 %s15, %s22
      %p45 = scmp.eq.s32.totalorder %s44, 0
      %s47 = sadd.s32 %s46, 1
      %s48 = scalar_select %p45, %s46, %s47
      %p51 = pneg %p45
      %p52 = scmp.eq.s32.totalorder %s15, 1
      %p53 = por %p51, %p52
      %p54 = scmp.ne.s32.totalorder %s46, %s49
      %p55 = scmp.eq.s32.totalorder %s15, 0
      %p56 = por %p54, %p55
      %p57 = scmp.ne.s32.totalorder %s46, %s49
      %p58 = scmp.eq.s32.totalorder %s20, 1
      %p59 = por %p57, %p58
      %p60 = scmp.ne.s32.totalorder %s49, %s50
      %p61 = scmp.eq.s32.totalorder %s20, 0
      %p62 = por %p60, %p61
      %p63 = scmp.ne.s32.totalorder %s49, %s50
      %p64 = scmp.eq.s32.totalorder %s21, 1
      %p65 = por %p63, %p64
      %p67 = scmp.ne.s32.totalorder %s50, %s66
      %p68 = scmp.eq.s32.totalorder %s21, 0
      %p69 = por %p67, %p68
      %s70 = ssub.s32 %s15, %s22
      %p71 = scmp.eq.s32.totalorder %s70, 0
      %s73 = sadd.s32 %s72, 1
      %s74 = scalar_select %p71, %s72, %s73
      %p77 = pneg %p71
      %p78 = scmp.eq.s32.totalorder %s15, 1
      %p79 = por %p77, %p78
      %p80 = scmp.ne.s32.totalorder %s72, %s75
      %p81 = scmp.eq.s32.totalorder %s15, 0
      %p82 = por %p80, %p81
      %p83 = scmp.ne.s32.totalorder %s72, %s75
      %p84 = scmp.eq.s32.totalorder %s20, 1
      %p85 = por %p83, %p84
      %p86 = scmp.ne.s32.totalorder %s75, %s76
      %p87 = scmp.eq.s32.totalorder %s20, 0
      %p88 = por %p86, %p87
      %p89 = scmp.ne.s32.totalorder %s75, %s76
      %p90 = scmp.eq.s32.totalorder %s21, 1
      %p91 = por %p89, %p90
      %p93 = scmp.ne.s32.totalorder %s76, %s92
      %p94 = scmp.eq.s32.totalorder %s21, 0
      %p95 = por %p93, %p94
      %p96 = scmp.le.s32.totalorder 1, %s15
      %p97 = scmp.lt.s32.totalorder %s15, 3
      %p98 = pnand %p96, %p97
      %p99 = pneg %p98
      // Predicated region
      $region9: #{tpu_custom_call.1} parent=5 // pred_check
        _
      $region10: #{tpu_custom_call.1} parent=5 // pred_check_branch
        %101 = sbr.rel (%p98) target = $region12
      $region11: #{tpu_custom_call.1} parent=5 // pred_region
        %s102 = ssub.s32 %s15, 1
        // Predicated region
        $region13: #{tpu_custom_call.1} parent=11 // pred_check
          %p103 = pneg %p36
        $region14: #{tpu_custom_call.1} parent=11 // pred_check_branch
          %105 = sbr.rel (%p103) target = $region16
        $region15: #{tpu_custom_call.1} parent=11 // pred_region
          %107 = vsyncadd [#allocation3], 0
          %s109 = sshll.u32 %s0, 4
          %s110 = int_to_ptr.hbm [resolvable:$true] %s109
          %s111 = sshll.u32 [#allocation2], 4
          %s112 = int_to_ptr.vmem [resolvable:$true] %s111
          %114 = dma.hbm_to_vmem [thread:$0]  %s110, 32, %s112, [#allocation3]
        $region16: #{tpu_custom_call.1} parent=11 // pred_fallthru
          _
      $region12: #{tpu_custom_call.1} parent=5 // pred_fallthru
        _
      %p115 = scmp.lt.s32.totalorder %s15, 2
      // Predicated region
      $region17: #{tpu_custom_call.1} parent=5 // pred_check
        %p116 = pneg %p115
      $region18: #{tpu_custom_call.1} parent=5 // pred_check_branch
        %118 = sbr.rel (%p116) target = $region20
      $region19: #{tpu_custom_call.1} parent=5 // pred_region
        // Predicated region
        $region21: #{tpu_custom_call.1} parent=19 // pred_check
          %p119 = pneg %p56
        $region22: #{tpu_custom_call.1} parent=19 // pred_check_branch
          %121 = sbr.rel (%p119) target = $region24
        $region23: #{tpu_custom_call.1} parent=19 // pred_region
          %s122 = sand.u32 %s46, 1
          %s123 = scalar_lea.sflag [#allocation6], %s122
          %s124 = sand.u32 %s46, 1
          %s125 = smul.addr %s124, 8
          %s126 = scalar_lea.vmem [#allocation5], %s125
          %128 = vsyncadd %s123, 0
          %s129 = smul.addr %s15, 8
          %s130 = scalar_lea.hbm %s1, %s129
          %s132 = sshll.u32 %s130, 4
          %s133 = int_to_ptr.hbm [resolvable:$true] %s132
          %s134 = sshll.u32 %s126, 4
          %s135 = int_to_ptr.vmem [resolvable:$true] %s134
          %137 = dma.hbm_to_vmem [thread:$0]  %s133, 128, %s135, %s123
        $region24: #{tpu_custom_call.1} parent=19 // pred_fallthru
          _
      $region20: #{tpu_custom_call.1} parent=5 // pred_fallthru
        _
      %p138 = scmp.le.s32.totalorder 1, %s15
      %p139 = scmp.lt.s32.totalorder %s15, 3
      %p140 = pnand %p138, %p139
      %p141 = pneg %p140
      // Predicated region
      $region25: #{tpu_custom_call.1} parent=5 // pred_check
        _
      $region26: #{tpu_custom_call.1} parent=5 // pred_check_branch
        %143 = sbr.rel (%p140) target = $region28
      $region27: #{tpu_custom_call.1} parent=5 // pred_region
        %s144 = ssub.s32 %s15, 1
        // Predicated region
        $region29: #{tpu_custom_call.1} parent=27 // pred_check
          %p145 = pneg %p36
        $region30: #{tpu_custom_call.1} parent=27 // pred_check_branch
          %147 = sbr.rel (%p145) target = $region32
        $region31: #{tpu_custom_call.1} parent=27 // pred_region
          %149 = dma.done [#allocation3], 32
        $region32: #{tpu_custom_call.1} parent=27 // pred_fallthru
          _
        %s150 = sand.u32 %s49, 1
        %s151 = scalar_lea.sflag [#allocation6], %s150
        %s152 = sand.u32 %s49, 1
        %s153 = smul.addr %s152, 8
        %s154 = scalar_lea.vmem [#allocation5], %s153
        // Predicated region
        $region33: #{tpu_custom_call.1} parent=27 // pred_check
          %p155 = pneg %p62
        $region34: #{tpu_custom_call.1} parent=27 // pred_check_branch
          %157 = sbr.rel (%p155) target = $region36
        $region35: #{tpu_custom_call.1} parent=27 // pred_region
          %159 = dma.done %s151, 128
        $region36: #{tpu_custom_call.1} parent=27 // pred_fallthru
          _
        %p160 = pneg %p36
        %p161 = pneg %p33
        %s162 = sand.u32 %s49, 1
        %s163 = scalar_lea.sflag [#allocation6], %s162
        %s164 = sand.u32 %s49, 1
        %s165 = smul.addr %s164, 8
        %s166 = scalar_lea.vmem [#allocation5], %s165
        %p167 = pneg %p62
        %p168 = pneg %p59
        %p169 = pneg %p88
        %p170 = pneg %p85
        %s171 = sand.u32 %s75, 1
        %s172 = scalar_lea.sflag [#allocation4], %s171
        %s173 = sand.u32 %s75, 1
        %s174 = smul.addr %s173, 8
        %s175 = scalar_lea.vmem [#allocation7], %s174
        %v176 = vld [vmem:[%s154] sm:$0xff]
        %178 = vrot.lane.b32.xlu0 %v176, 1
        %v179 = vpop.permute.xlu0 %178
        %vm181 = vcmask 7168
        %v182 = vsel %vm181, %v176, %v179
        %183 = vrot.lane.b32.xlu0 %v176, 127
        %v184 = vpop.permute.xlu0 %183
        %vm186 = vcmask 1039360
        %v187 = vsel %vm186, %v184, %v176
        %v188 = vld [vmem:[#allocation2] sm:$0x1]
        %v189 = vld [vmem:[#allocation2 + $0x1] sm:$0x1]
        %v190 = vperm.slane %v188, 0
        %v191 = vmul.f32 %v190, %v182
        %v192 = vperm.slane %v189, 0
        %v193 = vmul.f32 %v192, %v187
        %v194 = vadd.f32 %v191, %v193
        %v195 = vadd.f32 %v176, %v176
        %v196 = vsub.f32 %v194, %v195
        %197 = vst [vmem:[%s175] sm:$0xff] %v196
        %s198 = sand.u32 %s75, 1
        %s199 = scalar_lea.sflag [#allocation4], %s198
        %s200 = sand.u32 %s75, 1
        %s201 = smul.addr %s200, 8
        %s202 = scalar_lea.vmem [#allocation7], %s201
        // Predicated region
        $region37: #{tpu_custom_call.1} parent=27 // pred_check
          %p203 = pneg %p85
        $region38: #{tpu_custom_call.1} parent=27 // pred_check_branch
          %205 = sbr.rel (%p203) target = $region40
        $region39: #{tpu_custom_call.1} parent=27 // pred_region
          %207 = vsyncadd %s199, 0
          %s208 = smul.addr %s20, 8
          %s209 = scalar_lea.hbm %s2, %s208
          %s211 = sshll.u32 %s202, 4
          %s212 = int_to_ptr.vmem [resolvable:$true] %s211
          %s213 = sshll.u32 %s209, 4
          %s214 = int_to_ptr.hbm [resolvable:$true] %s213
          %216 = dma.vmem_to_hbm [thread:$0]  %s212, 128, %s214, %s199
        $region40: #{tpu_custom_call.1} parent=27 // pred_fallthru
          _
      $region28: #{tpu_custom_call.1} parent=5 // pred_fallthru
        _
      %p217 = scmp.le.s32.totalorder 2, %s15
      // Predicated region
      $region41: #{tpu_custom_call.1} parent=5 // pred_check
        %p218 = pneg %p217
      $region42: #{tpu_custom_call.1} parent=5 // pred_check_branch
        %220 = sbr.rel (%p218) target = $region44
      $region43: #{tpu_custom_call.1} parent=5 // pred_region
        %s221 = ssub.s32 %s15, 2
        // Predicated region
        $region45: #{tpu_custom_call.1} parent=43 // pred_check
          %p222 = pneg %p91
        $region46: #{tpu_custom_call.1} parent=43 // pred_check_branch
          %224 = sbr.rel (%p222) target = $region48
        $region47: #{tpu_custom_call.1} parent=43 // pred_region
          %s225 = sand.u32 %s76, 1
          %s226 = scalar_lea.sflag [#allocation4], %s225
          %s227 = sand.u32 %s76, 1
          %s228 = smul.addr %s227, 8
          %s229 = scalar_lea.vmem [#allocation7], %s228
          %231 = dma.done %s226, 128
        $region48: #{tpu_custom_call.1} parent=43 // pred_fallthru
          _
      $region44: #{tpu_custom_call.1} parent=5 // pred_fallthru
        _
    $region6: #{tpu_custom_call.1} parent=1 // loop_footer
      %s19 = sadd.s32 1, %s15
    $region7: #{tpu_custom_call.1} parent=1 // loop_footer_branch
      %14 = sbr.rel target = $region3
    $region8: #{tpu_custom_call.1} parent=1 // loop_exit
      _
    %232 = vsyncpa [#allocation3], 1
    %s233 = scalar_lea.sflag [#allocation3], 1
    %234 = vsyncpa %s233, 1
    %235 = vsyncpa [#allocation6], 1
    %s236 = scalar_lea.sflag [#allocation6], 1
    %237 = vsyncpa %s236, 1
    %238 = vsyncpa [#allocation4], 1
    %s239 = scalar_lea.sflag [#allocation4], 1
    %240 = vsyncpa %s239, 1

</llo_original>
